<compile_context>
chip_gen: v7x
topology: tpu7x:2x2x1
jax: 0.10.0
libtpu: 0.0.40
codegen_flags: <defaults>
</compile_context>

<pallas_src>
import jax
import jax.numpy as jnp
from jax import lax
from jax.experimental import pallas as pl
from jax.experimental.pallas import tpu as pltpu


# ---------------------------------------------------------------------------
# Kernels
# ---------------------------------------------------------------------------
def _residual_linear_kernel(x_ref, w_ref, b_ref, o_ref):
    """Resident-weight path.  x_ref:(TM,H) w_ref:(H,H) b_ref:(1,H) o_ref:(TM,H)."""
    x = x_ref[...]  # load once, reused for the dot and the residual add
    # TODO(synk): optionally cast f32 dot operands to bf16 (keep f32 accumulate)
    # when model tolerance allows -- up to ~4x MXU rate in the compute-bound regime.
    y = jnp.dot(x, w_ref[...], preferred_element_type=jnp.float32)
    out = x.astype(jnp.float32) + y + b_ref[...].astype(jnp.float32)
    o_ref[...] = out.astype(o_ref.dtype)


def _make_ktiled_kernel(H, tk):
    """K-tiled path (P3 accumulator pattern).  Grid = (gm, gn, gk), k innermost."""
    ragged_k = (H % tk) != 0

    def kernel(x_ref, r_ref, w_ref, b_ref, o_ref, acc_ref):
        # x_ref:(TM,TK) r_ref:(TM,TN) w_ref:(TK,TN) b_ref:(1,TN) o_ref:(TM,TN)
        k = pl.program_id(2)

        @pl.when(k == 0)
        def _():
            # Fold residual + bias into the f32 accumulator init.  r_ref's
            # index_map is constant over k, so it is DMA'd once per output tile.
            acc_ref[...] = (r_ref[...].astype(jnp.float32)
                            + b_ref[...].astype(jnp.float32))

        xk = x_ref[...]
        wk = w_ref[...]
        if ragged_k:
            # Last K block is partial: OOB lanes of edge input blocks hold
            # unspecified data, so zero both operands' invalid K range.
            rem = H - k * tk
            kcol = lax.broadcasted_iota(jnp.int32, xk.shape, 1)
            xk = jnp.where(kcol < rem, xk, jnp.zeros_like(xk))
            krow = lax.broadcasted_iota(jnp.int32, wk.shape, 0)
            wk = jnp.where(krow < rem, wk, jnp.zeros_like(wk))

        acc_ref[...] += jnp.dot(xk, wk, preferred_element_type=jnp.float32)

        @pl.when(k == pl.num_programs(2) - 1)
        def _():
            o_ref[...] = acc_ref[...].astype(o_ref.dtype)

    return kernel


# ---------------------------------------------------------------------------
# Tiling helpers
# ---------------------------------------------------------------------------
def _round_up(n, m):
    return ((n + m - 1) // m) * m


def _row_align(dtype):
    # Sublane packing: f32 -> 8 rows / vreg, bf16 -> 16, int8/fp8 -> 32.
    return max(8, 32 // jnp.dtype(dtype).itemsize)


def _tpu_vmem_capacity_bytes():
    try:
        info = pltpu.get_tpu_info()
        cap = getattr(info, "vmem_capacity_bytes", None)
        if cap:
            return int(cap)
    except Exception:
        pass
    # Conservative fallback = v7x per-core physical VMEM (never over-commits).
    return 64 << 20


# ---------------------------------------------------------------------------
# Wrapper
# ---------------------------------------------------------------------------
def residual_linear(x, w, b, *, tm=None, tn=None, tk=None, vmem_budget_bytes=None):
    """out = x + (x @ w + b), fused in a single Pallas kernel.

    x: [B, S, H];  w: [H, H] (in_dim x out_dim, i.e. PyTorch W.T);  b: [H]
    """
    B, S, H = x.shape
    M = B * S
    x2 = x.reshape(M, H)
    b2 = b.reshape(1, H)
    itemsize = jnp.dtype(x.dtype).itemsize
    ra = _row_align(x.dtype)

    # --- generation-aware VMEM budget -------------------------------------
    cap = _tpu_vmem_capacity_bytes()
    vmem_limit = int(cap * 8 // 10)                      # ~51 MiB v7x, ~102 MiB v5e/v6e
    budget = (int(vmem_budget_bytes) if vmem_budget_bytes is not None
              else int(cap * 7 // 10))                   # buffer-sizing budget
    vmem_limit = max(vmem_limit, min(int(cap), budget))

    cost = pl.CostEstimate(
        flops=2 * M * H * H,
        transcendentals=0,
        bytes_accessed=(2 * M * H + H * H + H) * itemsize,
    )

    # --- path selection -----------------------------------------------------
    # Resident-W path: whole HxH weight (budgeted at 2 buffers to be safe) plus
    # double-buffered x/out tiles of at least ~256 rows must fit the budget.
    w_bytes_2buf = 2 * H * H * itemsize
    stream_min = 4 * min(M, 256) * H * itemsize
    resident_fits = (tn is None and tk is None and
                     w_bytes_2buf + stream_min + 2 * H * itemsize <= budget)

    if resident_fits:
        # ------------------- Path A: weight fully VMEM-resident -------------
        if tm is not None:
            tm_a = max(1, min(int(tm), M))
        else:
            avail = budget - w_bytes_2buf - 2 * H * itemsize
            tm_cap = max(ra, avail // (4 * H * itemsize))   # x + out double-buffered
            tm_a = min(M, 2048, tm_cap)
            if tm_a < M:
                tm_a = max(ra, (tm_a // ra) * ra)           # sublane-aligned tile
            elif M >= 2 * ra:
                # v7x has 2 TensorCores: give the parallel M axis >= 2 blocks.
                tm_a = _round_up((M + 1) // 2, ra)
        gm = pl.cdiv(M, tm_a)

        out2 = pl.pallas_call(
            _residual_linear_kernel,
            out_shape=jax.ShapeDtypeStruct((M, H), x.dtype),
            grid_spec=pltpu.PrefetchScalarGridSpec(
                num_scalar_prefetch=0,
                grid=(gm,),
                in_specs=[
                    pl.BlockSpec((tm_a, H), lambda i: (i, 0)),   # activations stream over M
                    pl.BlockSpec((H, H), lambda i: (0, 0)),      # weight: VMEM-resident
                    pl.BlockSpec((1, H), lambda i: (0, 0)),      # bias: VMEM-resident
                ],
                out_specs=pl.BlockSpec((tm_a, H), lambda i: (i, 0)),
            ),
            compiler_params=pltpu.CompilerParams(
                dimension_semantics=("parallel",),
                vmem_limit_bytes=int(vmem_limit),
            ),
            cost_estimate=cost,
        )(x2, w, b2)
        return out2.reshape(B, S, H)

    # ----------------------- Path C: K-tiled accumulator --------------------
    tk_c = int(tk) if tk is not None else (H if H <= 1024 else 1024)
    tk_c = min(tk_c, H)

    if tn is not None:
        tn_list = [max(1, min(int(tn), H))]
    else:
        tn_list = sorted({H} | {c for c in (4096, 2048, 1024, 512, 256, 128) if c < H},
                         reverse=True)
    if tm is not None:
        tm_list = [max(1, min(int(tm), M))]
    else:
        tm_list = sorted({M} | {c for c in (2048, 1024, 512, 256, 128, 64, 32, 16, 8)
                                if c % ra == 0 and c < M},
                         reverse=True)

    def _fits(tm_c, tn_c):
        bytes_ = 2 * (tm_c * tk_c           # x tile (double-buffered)
                      + tk_c * tn_c         # weight tile
                      + 2 * tm_c * tn_c     # residual + output tiles
                      + tn_c) * itemsize    # bias tile
        bytes_ += tm_c * tn_c * 4           # f32 accumulator scratch (single)
        return bytes_ <= budget

    best = None
    for cand_tn in tn_list:
        for cand_tm in tm_list:
            if _fits(cand_tm, cand_tn):
                score = 1.0 / cand_tm + 1.0 / cand_tn   # minimize re-streamed HBM traffic
                if best is None or score < best[0]:
                    best = (score, cand_tm, cand_tn)
    if best is None:
        tm_c, tn_c = min(M, ra), (128 if H >= 128 else H)
    else:
        _, tm_c, tn_c = best

    gm = pl.cdiv(M, tm_c)
    gn = pl.cdiv(H, tn_c)
    gk = pl.cdiv(H, tk_c)

    out2 = pl.pallas_call(
        _make_ktiled_kernel(H, tk_c),
        out_shape=jax.ShapeDtypeStruct((M, H), x.dtype),
        grid_spec=pltpu.PrefetchScalarGridSpec(
            num_scalar_prefetch=0,
            grid=(gm, gn, gk),
            in_specs=[
                pl.BlockSpec((tm_c, tk_c), lambda i, j, k: (i, k)),   # matmul operand
                pl.BlockSpec((tm_c, tn_c), lambda i, j, k: (i, j)),   # residual (const over k)
                pl.BlockSpec((tk_c, tn_c), lambda i, j, k: (k, j)),   # weight tile
                pl.BlockSpec((1, tn_c), lambda i, j, k: (0, j)),      # bias tile
            ],
            out_specs=pl.BlockSpec((tm_c, tn_c), lambda i, j, k: (i, j)),
            scratch_shapes=[pltpu.VMEM((tm_c, tn_c), jnp.float32)],
        ),
        compiler_params=pltpu.CompilerParams(
            dimension_semantics=("parallel", "parallel", "arbitrary"),
            vmem_limit_bytes=int(vmem_limit),
        ),
        cost_estimate=cost,
    )(x2, x2, w, b2)
    return out2.reshape(B, S, H)


# ---------------------------------------------------------------------------
# Test harness
# ---------------------------------------------------------------------------
def _make_inputs(key, B, S, H, dtype=jnp.float32):
    kx, kw, kb = jax.random.split(key, 3)
    x = jax.random.normal(kx, (B, S, H), dtype=dtype)
    # Deterministic parameters for fn = Linear(H, H); w stored as (in, out),
    # i.e. the transpose of PyTorch's weight layout.
    w = jax.random.normal(kw, (H, H), dtype=dtype) / jnp.sqrt(H).astype(dtype)
    b = jax.random.normal(kb, (H,), dtype=dtype) * dtype(0.01)
    return x, w, b


if __name__ == "__main__":
    key = jax.random.PRNGKey(0)

    # 1) Canonical small shape implied by the module.
    B, S, H = 2, 8, 32
    x, w, b = _make_inputs(key, B, S, H)
    out = residual_linear(x, w, b)
    jax.block_until_ready(out)
    ref = x + (x @ w + b)
    assert out.shape == x.shape and out.dtype == x.dtype
    assert jnp.allclose(out, ref, atol=1e-4, rtol=1e-4)

    # 2) M-streamed resident-weight path (M = 1024 -> >= 2 parallel M blocks).
    x2, w2, b2 = _make_inputs(jax.random.PRNGKey(1), 4, 256, 256)
    out2 = residual_linear(x2, w2, b2)
    jax.block_until_ready(out2)
    ref2 = x2 + (x2 @ w2 + b2)
    assert jnp.allclose(out2, ref2, atol=1e-2, rtol=1e-2)

    # 3) K/N-tiled accumulator path, forced via a small VMEM budget
    #    (also exercises the ragged last K block: 1536 = 1024 + 512).
    x3, w3, b3 = _make_inputs(jax.random.PRNGKey(2), 2, 64, 1536)
    out3 = residual_linear(x3, w3, b3, vmem_budget_bytes=8 << 20)
    jax.block_until_ready(out3)
    ref3 = x3 + (x3 @ w3 + b3)
    assert jnp.allclose(out3, ref3, atol=2e-2, rtol=2e-2)

    # 4) Ragged M and non-multiple-of-128 H.
    x4, w4, b4 = _make_inputs(jax.random.PRNGKey(3), 2, 12, 160)
    out4 = residual_linear(x4, w4, b4)
    jax.block_until_ready(out4)
    ref4 = x4 + (x4 @ w4 + b4)
    assert jnp.allclose(out4, ref4, atol=1e-3, rtol=1e-3)

    # 5) bf16 inputs (16-row sublane alignment), f32 accumulation in-kernel.
    x5, w5, b5 = _make_inputs(jax.random.PRNGKey(4), 2, 128, 512, dtype=jnp.bfloat16)
    out5 = residual_linear(x5, w5, b5)
    jax.block_until_ready(out5)
    ref5 = (x5.astype(jnp.float32)
            + x5.astype(jnp.float32) @ w5.astype(jnp.float32)
            + b5.astype(jnp.float32))
    assert out5.dtype == jnp.bfloat16
    assert jnp.allclose(out5.astype(jnp.float32), ref5, atol=1e-1, rtol=1e-1)

    print("KERNEL_OK")
</pallas_src>

<mosaic_0001>
module attributes {stable_mosaic.version = 11 : i64} {
  func.func @_residual_linear_kernel(%arg0: i32, %arg1: memref<8x32xf32, #tpu.memory_space<vmem>>, %arg2: memref<32x32xf32, #tpu.memory_space<vmem>>, %arg3: memref<1x32xf32, #tpu.memory_space<vmem>>, %arg4: memref<8x32xf32, #tpu.memory_space<vmem>>) attributes {dimension_semantics = [#tpu.dimension_semantics<parallel>], iteration_bounds = array<i64: 2>, scalar_prefetch = 0 : i64, scratch_operands = 0 : i64, tpu.core_type = #tpu.core_type<tc>, window_params = [{transform_indices = @transform_0, window_bounds = array<i64: 8, 32>}, {pipeline_mode = #tpu.pipeline_mode<synchronous>, transform_indices = @transform_1, window_bounds = array<i64: 32, 32>}, {pipeline_mode = #tpu.pipeline_mode<synchronous>, transform_indices = @transform_2, window_bounds = array<i64: 1, 32>}, {transform_indices = @transform_3, window_bounds = array<i64: 8, 32>}]} {
    %c0 = arith.constant 0 : index
    %c0_0 = arith.constant 0 : index
    %0 = vector.load %arg1[%c0, %c0_0] : memref<8x32xf32, #tpu.memory_space<vmem>>, vector<8x32xf32>
    %c0_1 = arith.constant 0 : index
    %c0_2 = arith.constant 0 : index
    %1 = vector.load %arg2[%c0_1, %c0_2] : memref<32x32xf32, #tpu.memory_space<vmem>>, vector<32x32xf32>
    %cst = arith.constant dense<0.000000e+00> : vector<8x32xf32>
    %2 = tpu.matmul %0, %1, %cst {dimension_numbers = #tpu.dot_dimension_numbers<[1], [0], [0], [1], [0, 0, 1, 1], [], []>} : vector<8x32xf32>, vector<32x32xf32>, vector<8x32xf32> -> vector<8x32xf32>
    %3 = arith.addf %0, %2 : vector<8x32xf32>
    %c0_3 = arith.constant 0 : index
    %c0_4 = arith.constant 0 : index
    %4 = vector.load %arg3[%c0_3, %c0_4] : memref<1x32xf32, #tpu.memory_space<vmem>>, vector<1x32xf32>
    %5 = vector.broadcast %4 : vector<1x32xf32> to vector<8x32xf32>
    %6 = arith.addf %3, %5 : vector<8x32xf32>
    %c0_5 = arith.constant 0 : index
    %c0_6 = arith.constant 0 : index
    %7 = vector.load %arg4[%c0_5, %c0_6] : memref<8x32xf32, #tpu.memory_space<vmem>>, vector<8x32xf32>
    tpu.vector_store %arg4[%c0_5, %c0_6], %6 {strides = array<i32>} : memref<8x32xf32, #tpu.memory_space<vmem>>, vector<8x32xf32>,
    return
  }
  func.func @transform_0(%arg0: i32) -> (i32, i32) {
    %c0_i32 = arith.constant 0 : i32
    %c0_i32_0 = arith.constant 0 : i32
    return %arg0, %c0_i32 : i32, i32
  }
  func.func @transform_1(%arg0: i32) -> (i32, i32) {
    %c0_i32 = arith.constant 0 : i32
    %c0_i32_0 = arith.constant 0 : i32
    %c0_i32_1 = arith.constant 0 : i32
    return %c0_i32, %c0_i32_0 : i32, i32
  }
  func.func @transform_2(%arg0: i32) -> (i32, i32) {
    %c0_i32 = arith.constant 0 : i32
    %c0_i32_0 = arith.constant 0 : i32
    %c0_i32_1 = arith.constant 0 : i32
    return %c0_i32, %c0_i32_0 : i32, i32
  }
  func.func @transform_3(%arg0: i32) -> (i32, i32) {
    %c0_i32 = arith.constant 0 : i32
    %c0_i32_0 = arith.constant 0 : i32
    return %arg0, %c0_i32 : i32, i32
  }
}

</mosaic_0001>

<llo_original>
// kernel: tpu_custom_call.1
$region0: #{tpu_custom_call.1}
  #allocation0 [shape = 'u32[]', space=smem, size = 0x4, offset = 0x4, fixed_abs, tag = 'smem constant byte address 0x4 - core index']
  #allocation1 [shape = 'u32[144,128]{1,0:T(1,128)}', space=vmem, size = 0x12000, scoped, tag = 'internal scratch']
  %s0 = inlined_call_operand.hbm [shape: f32[16,32], index: 0, kind: input, shape index: {}]
  %s1 = inlined_call_operand.hbm [shape: f32[32,32], index: 1, kind: input, shape index: {}]
  %s2 = inlined_call_operand.vmem [shape: f32[1,32], index: 2, kind: input, shape index: {}]
  %s3 = inlined_call_operand.hbm [shape: f32[16,32], index: 3, kind: output, shape index: {}]
  %s4 = sld [smem:[#allocation0]]
  $region53: #{tpu_custom_call.1} parent=0
    _
  %s6 = ssub.s32 1, %s4
  %s7 = scalar_select 0, %s6, %s4
  $region1: #{tpu_custom_call.1} parent=0
    #allocation2 [shape = 'u8[8192]{0}', space=vmem, size = 0x2000, scoped, tag = 'input window, operand 0']
    #allocation3 [shape = 's32[2]{0}', space=sflag, size = 0x8, scoped, tag = 'scoped memory for tpu_custom_call.1']
    #allocation4 [shape = 's32[2]{0}', space=sflag, size = 0x8, scoped, tag = 'scoped memory for tpu_custom_call.1']
    #allocation5 [shape = 'u8[16384]{0}', space=vmem, size = 0x4000, scoped, tag = 'input window, operand 1, single buffered']
    #allocation6 [shape = 's32[1]{0}', space=sflag, size = 0x4, scoped, tag = 'scoped memory for tpu_custom_call.1']
    #allocation7 [shape = 'u8[8192]{0}', space=vmem, size = 0x2000, scoped, tag = 'output window, operand 0']
    %8 = vsyncpa [#allocation3], 0
    %s9 = scalar_lea.sflag [#allocation3], 1
    %10 = vsyncpa %s9, 0
    %11 = vsyncpa [#allocation6], 0
    %12 = vsyncpa [#allocation4], 0
    %s13 = scalar_lea.sflag [#allocation4], 1
    %14 = vsyncpa %s13, 0
    loop: start=0, step=1, limit=4
    $region2: #{tpu_custom_call.1} parent=1 // loop_pre_header
      _
    $region3: #{tpu_custom_call.1} parent=1 // loop_header
      %s16 = sphi 0, %s20
      %p17 = scmp.ge.s32.totalorder %s16, 4
      %s26 = sphi 0, %s28
      %s29 = sphi 0, %s26
      %s30 = sphi 0, %s29
      %s46 = sphi 0, %s30
      %s50 = sphi 0, %s50
      %s52 = sphi 0, %s50
      %s53 = sphi 0, %s52
      %s67 = sphi 0, %s53
      %s71 = sphi 0, %s71
      %s73 = sphi 0, %s71
      %s74 = sphi 0, %s73
      %s88 = sphi 0, %s74
      %s94 = sphi 0, %s96
      %s97 = sphi 0, %s94
      %s98 = sphi 0, %s97
      %s114 = sphi 0, %s98
    $region4: #{tpu_custom_call.1} parent=1 // loop_header_branch
      %19 = sbr.rel (%p17) target = $region8
    $region5: #{tpu_custom_call.1} parent=1 // loop_body
      %s21 = ssub.s32 %s16, 1
      %s22 = ssub.s32 %s16, 2
      %s23 = sadd.s32 %s16, 1
      %s24 = ssub.s32 %s16, %s23
      %p25 = scmp.eq.s32.totalorder %s24, 0
      %s27 = sadd.s32 %s26, 1
      %s28 = scalar_select %p25, %s26, %s27
      %p31 = pneg %p25
      %p32 = scmp.eq.s32.totalorder %s16, 1
      %p33 = por %p31, %p32
      %p34 = scmp.ne.s32.totalorder %s26, %s29
      %p35 = scmp.eq.s32.totalorder %s16, 0
      %p36 = por %p34, %p35
      %p37 = scmp.ne.s32.totalorder %s26, %s29
      %p38 = scmp.eq.s32.totalorder %s21, 1
      %p39 = por %p37, %p38
      %p40 = scmp.ne.s32.totalorder %s29, %s30
      %p41 = scmp.eq.s32.totalorder %s21, 0
      %p42 = por %p40, %p41
      %p43 = scmp.ne.s32.totalorder %s29, %s30
      %p44 = scmp.eq.s32.totalorder %s22, 1
      %p45 = por %p43, %p44
      %p47 = scmp.ne.s32.totalorder %s30, %s46
      %p48 = scmp.eq.s32.totalorder %s22, 0
      %p49 = por %p47, %p48
      %s51 = sadd.s32 %s50, 1
      %p54 = scmp.eq.s32.totalorder %s16, 1
      %p55 = scmp.ne.s32.totalorder %s50, %s52
      %p56 = scmp.eq.s32.totalorder %s16, 0
      %p57 = por %p55, %p56
      %p58 = scmp.ne.s32.totalorder %s50, %s52
      %p59 = scmp.eq.s32.totalorder %s21, 1
      %p60 = por %p58, %p59
      %p61 = scmp.ne.s32.totalorder %s52, %s53
      %p62 = scmp.eq.s32.totalorder %s21, 0
      %p63 = por %p61, %p62
      %p64 = scmp.ne.s32.totalorder %s52, %s53
      %p65 = scmp.eq.s32.totalorder %s22, 1
      %p66 = por %p64, %p65
      %p68 = scmp.ne.s32.totalorder %s53, %s67
      %p69 = scmp.eq.s32.totalorder %s22, 0
      %p70 = por %p68, %p69
      %s72 = sadd.s32 %s71, 1
      %p75 = scmp.eq.s32.totalorder %s16, 1
      %p76 = scmp.ne.s32.totalorder %s71, %s73
      %p77 = scmp.eq.s32.totalorder %s16, 0
      %p78 = por %p76, %p77
      %p79 = scmp.ne.s32.totalorder %s71, %s73
      %p80 = scmp.eq.s32.totalorder %s21, 1
      %p81 = por %p79, %p80
      %p82 = scmp.ne.s32.totalorder %s73, %s74
      %p83 = scmp.eq.s32.totalorder %s21, 0
      %p84 = por %p82, %p83
      %p85 = scmp.ne.s32.totalorder %s73, %s74
      %p86 = scmp.eq.s32.totalorder %s22, 1
      %p87 = por %p85, %p86
      %p89 = scmp.ne.s32.totalorder %s74, %s88
      %p90 = scmp.eq.s32.totalorder %s22, 0
      %p91 = por %p89, %p90
      %s92 = ssub.s32 %s16, %s23
      %p93 = scmp.eq.s32.totalorder %s92, 0
      %s95 = sadd.s32 %s94, 1
      %s96 = scalar_select %p93, %s94, %s95
      %p99 = pneg %p93
      %p100 = scmp.eq.s32.totalorder %s16, 1
      %p101 = por %p99, %p100
      %p102 = scmp.ne.s32.totalorder %s94, %s97
      %p103 = scmp.eq.s32.totalorder %s16, 0
      %p104 = por %p102, %p103
      %p105 = scmp.ne.s32.totalorder %s94, %s97
      %p106 = scmp.eq.s32.totalorder %s21, 1
      %p107 = por %p105, %p106
      %p108 = scmp.ne.s32.totalorder %s97, %s98
      %p109 = scmp.eq.s32.totalorder %s21, 0
      %p110 = por %p108, %p109
      %p111 = scmp.ne.s32.totalorder %s97, %s98
      %p112 = scmp.eq.s32.totalorder %s22, 1
      %p113 = por %p111, %p112
      %p115 = scmp.ne.s32.totalorder %s98, %s114
      %p116 = scmp.eq.s32.totalorder %s22, 0
      %p117 = por %p115, %p116
      %p118 = scmp.le.s32.totalorder 1, %s16
      %p119 = scmp.lt.s32.totalorder %s16, 3
      %p120 = pnand %p118, %p119
      %p121 = pneg %p120
      // Predicated region
      $region9: #{tpu_custom_call.1} parent=5 // pred_check
        _
      $region10: #{tpu_custom_call.1} parent=5 // pred_check_branch
        %123 = sbr.rel (%p120) target = $region12
      $region11: #{tpu_custom_call.1} parent=5 // pred_region
        %s124 = ssub.s32 %s16, 1
        // Predicated region
        $region13: #{tpu_custom_call.1} parent=11 // pred_check
          %p125 = pneg %p63
        $region14: #{tpu_custom_call.1} parent=11 // pred_check_branch
          %127 = sbr.rel (%p125) target = $region16
        $region15: #{tpu_custom_call.1} parent=11 // pred_region
          %s129 = ssub.s32 512, 512
          %130 = vsyncadd [#allocation6], %s129
          %s131 = sshll.u32 [#allocation5], 4
          %s132 = int_to_ptr.vmem [resolvable:$true] %s131
          %137 = dma.hbm_to_vmem [thread:$0]  %s1, 512, %s132, [#allocation6], 128, 128, 8
        $region16: #{tpu_custom_call.1} parent=11 // pred_fallthru
          _
        // Predicated region
        $region17: #{tpu_custom_call.1} parent=11 // pred_check
          %p138 = pneg %p84
        $region18: #{tpu_custom_call.1} parent=11 // pred_check_branch
          %140 = sbr.rel (%p138) target = $region20
        $region19: #{tpu_custom_call.1} parent=11 // pred_region
          _
        $region20: #{tpu_custom_call.1} parent=11 // pred_fallthru
          _
      $region12: #{tpu_custom_call.1} parent=5 // pred_fallthru
        _
      %p141 = scmp.lt.s32.totalorder %s16, 2
      // Predicated region
      $region21: #{tpu_custom_call.1} parent=5 // pred_check
        %p142 = pneg %p141
      $region22: #{tpu_custom_call.1} parent=5 // pred_check_branch
        %144 = sbr.rel (%p142) target = $region24
      $region23: #{tpu_custom_call.1} parent=5 // pred_region
        // Predicated region
        $region25: #{tpu_custom_call.1} parent=23 // pred_check
          %p145 = pneg %p36
        $region26: #{tpu_custom_call.1} parent=23 // pred_check_branch
          %147 = sbr.rel (%p145) target = $region28
        $region27: #{tpu_custom_call.1} parent=23 // pred_region
          %s148 = sand.u32 %s26, 1
          %s149 = scalar_lea.sflag [#allocation3], %s148
          %s150 = sand.u32 %s26, 1
          %s151 = smul.addr %s150, 8
          %s152 = scalar_lea.vmem [#allocation2], %s151
          %s154 = ssub.s32 128, 128
          %155 = vsyncadd %s149, %s154
          %s156 = smul.addr %s16, 128
          %s157 = scalar_lea.hbm %s0, %s156
          %s159 = sshll.u32 %s152, 4
          %s160 = int_to_ptr.vmem [resolvable:$true] %s159
          %162 = dma.hbm_to_vmem [thread:$0]  %s157, 128, %s160, %s149
        $region28: #{tpu_custom_call.1} parent=23 // pred_fallthru
          _
      $region24: #{tpu_custom_call.1} parent=5 // pred_fallthru
        _
      %p163 = scmp.le.s32.totalorder 1, %s16
      %p164 = scmp.lt.s32.totalorder %s16, 3
      %p165 = pnand %p163, %p164
      %p166 = pneg %p165
      // Predicated region
      $region29: #{tpu_custom_call.1} parent=5 // pred_check
        _
      $region30: #{tpu_custom_call.1} parent=5 // pred_check_branch
        %168 = sbr.rel (%p165) target = $region32
      $region31: #{tpu_custom_call.1} parent=5 // pred_region
        %s169 = ssub.s32 %s16, 1
        %s170 = sand.u32 %s29, 1
        %s171 = scalar_lea.sflag [#allocation3], %s170
        %s172 = sand.u32 %s29, 1
        %s173 = smul.addr %s172, 8
        %s174 = scalar_lea.vmem [#allocation2], %s173
        // Predicated region
        $region33: #{tpu_custom_call.1} parent=31 // pred_check
          %p175 = pneg %p42
        $region34: #{tpu_custom_call.1} parent=31 // pred_check_branch
          %177 = sbr.rel (%p175) target = $region36
        $region35: #{tpu_custom_call.1} parent=31 // pred_region
          %178 = dma.done %s171, 128
        $region36: #{tpu_custom_call.1} parent=31 // pred_fallthru
          _
        // Predicated region
        $region37: #{tpu_custom_call.1} parent=31 // pred_check
          %p179 = pneg %p63
        $region38: #{tpu_custom_call.1} parent=31 // pred_check_branch
          %181 = sbr.rel (%p179) target = $region40
        $region39: #{tpu_custom_call.1} parent=31 // pred_region
          %182 = dma.done [#allocation6], 512
        $region40: #{tpu_custom_call.1} parent=31 // pred_fallthru
          _
        %s183 = sand.u32 %s29, 1
        %s184 = scalar_lea.sflag [#allocation3], %s183
        %s185 = sand.u32 %s29, 1
        %s186 = smul.addr %s185, 8
        %s187 = scalar_lea.vmem [#allocation2], %s186
        %p188 = pneg %p42
        %p189 = pneg %p39
        %p190 = pneg %p63
        %p191 = pneg %p60
        %p192 = pneg %p84
        %p193 = pneg %p81
        %p194 = pneg %p110
        %p195 = pneg %p107
        %s196 = sand.u32 %s97, 1
        %s197 = scalar_lea.sflag [#allocation4], %s196
        %s198 = sand.u32 %s97, 1
        %s199 = smul.addr %s198, 8
        %s200 = scalar_lea.vmem [#allocation7], %s199
        %v201 = vld [vmem:[%s174] sm:$0xff]
        %v202 = vld [vmem:[#allocation5] sm:$0xff]
        %v203 = vld [vmem:[#allocation5 + $0x8] sm:$0xff]
        %v204 = vld [vmem:[#allocation5 + $0x10] sm:$0xff]
        %v205 = vld [vmem:[#allocation5 + $0x18] sm:$0xff]
        %vm206 = vcmask 261120
        %v208 = vsel %vm206, %v201, 0
        %210 = vmatprep.subr.mxu0 0.0
        %211 = vmatpush1.msra.mxu0 %v202
        %212 = vmatprep.subr.mxu0 0.0
        %213 = vmatpush1.msra.mxu0 %v203
        %214 = vmatprep.subr.mxu0 0.0
        %215 = vmatpush1.msra.mxu0 %v204
        %216 = vmatprep.subr.mxu0 0.0
        %217 = vmatpush1.msra.mxu0 %v205
        %218 = vmatprep.subr.mxu0 0.0
        %219 = vmatpush1.msra.mxu0 0.0
        %220 = vmatprep.subr.mxu0 0.0
        %221 = vmatpush1.msra.mxu0 0.0
        %222 = vmatprep.subr.mxu0 0.0
        %223 = vmatpush1.msra.mxu0 0.0
        %224 = vmatprep.subr.mxu0 0.0
        %225 = vmatpush1.msra.mxu0 0.0
        %226 = vmatprep.subr.mxu0 0.0
        %227 = vmatpush1.msra.mxu0 0.0
        %228 = vmatprep.subr.mxu0 0.0
        %229 = vmatpush1.msra.mxu0 0.0
        %230 = vmatprep.subr.mxu0 0.0
        %231 = vmatpush1.msra.mxu0 0.0
        %232 = vmatprep.subr.mxu0 0.0
        %233 = vmatpush1.msra.mxu0 0.0
        %234 = vmatprep.subr.mxu0 0.0
        %235 = vmatpush1.msra.mxu0 0.0
        %236 = vmatprep.subr.mxu0 0.0
        %237 = vmatpush1.msra.mxu0 0.0
        %238 = vmatprep.subr.mxu0 0.0
        %239 = vmatpush1.msra.mxu0 0.0
        %240 = vmatprep.subr.mxu0 0.0
        %241 = vmatpush1.msra.mxu0 0.0
        %242 = vmatprep.subr.mxu0 0.0
        %243 = vmatpush1.msra.mxu0 0.0
        %244 = vmatprep.subr.mxu0 0.0
        %245 = vmatpush1.msra.mxu0 0.0
        %246 = vmatprep.subr.mxu0 0.0
        %247 = vmatpush1.msra.mxu0 0.0
        %248 = vmatprep.subr.mxu0 0.0
        %249 = vmatpush1.msra.mxu0 0.0
        %250 = vmatprep.subr.mxu0 0.0
        %251 = vmatpush1.msra.mxu0 0.0
        %252 = vmatprep.subr.mxu0 0.0
        %253 = vmatpush1.msra.mxu0 0.0
        %254 = vmatprep.subr.mxu0 0.0
        %255 = vmatpush1.msra.mxu0 0.0
        %256 = vmatprep.subr.mxu0 0.0
        %257 = vmatpush1.msra.mxu0 0.0
        %258 = vmatprep.subr.mxu0 0.0
        %259 = vmatpush1.msra.mxu0 0.0
        %260 = vmatprep.subr.mxu0 0.0
        %261 = vmatpush1.msra.mxu0 0.0
        %262 = vmatprep.subr.mxu0 0.0
        %263 = vmatpush1.msra.mxu0 0.0
        %264 = vmatprep.subr.mxu0 0.0
        %265 = vmatpush1.msra.mxu0 0.0
        %266 = vmatprep.subr.mxu0 0.0
        %267 = vmatpush1.msra.mxu0 0.0
        %268 = vmatprep.subr.mxu0 0.0
        %269 = vmatpush1.msra.mxu0 0.0
        %270 = vmatprep.subr.mxu0 0.0
        %271 = vmatpush1.msra.mxu0 0.0
        %272 = vmatprep.subr.mxu0 0.0
        %273 = vmatpush1.msra.mxu0 0.0
        %274 = vmatprep.mubr.f32.mxu0 0.0
        %275 = vmatmul.mubr.f32.gmra.mrb[0].mxu0 %v208
        %v276 = vpop.f32.mrb[0].mxu0
        %v277 = vadd.f32 0.0, %v276
        %v278 = vpop.f32.mrb[0].mxu0
        %279 = vdwg.mxu0
        %v280 = vadd.f32 %v201, %v277
        %v281 = vld [vmem:[%s2] sm:$0x1]
        %v283 = vlaneseq
        %v284 = vshrl.u32 %v283, 7
        %v285 = vsub.s32 0, %v284
        %v286 = vrot.slane %v281, %v285
        %v288 = vadd.f32 %v280, %v286
        %289 = vst.msk [vmem:[%s200] sm:$0xff] %vm206, %v288
        %s290 = sand.u32 %s97, 1
        %s291 = scalar_lea.sflag [#allocation4], %s290
        %s292 = sand.u32 %s97, 1
        %s293 = smul.addr %s292, 8
        %s294 = scalar_lea.vmem [#allocation7], %s293
        // Predicated region
        $region41: #{tpu_custom_call.1} parent=31 // pred_check
          %p295 = pneg %p107
        $region42: #{tpu_custom_call.1} parent=31 // pred_check_branch
          %297 = sbr.rel (%p295) target = $region44
        $region43: #{tpu_custom_call.1} parent=31 // pred_region
          %s299 = ssub.s32 128, 128
          %300 = vsyncadd %s291, %s299
          %s301 = smul.addr %s21, 128
          %s302 = scalar_lea.hbm %s3, %s301
          %s304 = sshll.u32 %s294, 4
          %s305 = int_to_ptr.vmem [resolvable:$true] %s304
          %307 = dma.vmem_to_hbm [thread:$0]  %s305, 128, %s302, %s291
        $region44: #{tpu_custom_call.1} parent=31 // pred_fallthru
          _
      $region32: #{tpu_custom_call.1} parent=5 // pred_fallthru
        _
      %p308 = scmp.le.s32.totalorder 2, %s16
      // Predicated region
      $region45: #{tpu_custom_call.1} parent=5 // pred_check
        %p309 = pneg %p308
      $region46: #{tpu_custom_call.1} parent=5 // pred_check_branch
        %311 = sbr.rel (%p309) target = $region48
      $region47: #{tpu_custom_call.1} parent=5 // pred_region
        %s312 = ssub.s32 %s16, 2
        // Predicated region
        $region49: #{tpu_custom_call.1} parent=47 // pred_check
          %p313 = pneg %p113
        $region50: #{tpu_custom_call.1} parent=47 // pred_check_branch
          %315 = sbr.rel (%p313) target = $region52
        $region51: #{tpu_custom_call.1} parent=47 // pred_region
          %s316 = sand.u32 %s98, 1
          %s317 = scalar_lea.sflag [#allocation4], %s316
          %s318 = sand.u32 %s98, 1
          %s319 = smul.addr %s318, 8
          %s320 = scalar_lea.vmem [#allocation7], %s319
          %321 = dma.done %s317, 128
        $region52: #{tpu_custom_call.1} parent=47 // pred_fallthru
          _
      $region48: #{tpu_custom_call.1} parent=5 // pred_fallthru
        _
    $region6: #{tpu_custom_call.1} parent=1 // loop_footer
      %s20 = sadd.s32 1, %s16
    $region7: #{tpu_custom_call.1} parent=1 // loop_footer_branch
      %15 = sbr.rel target = $region3
    $region8: #{tpu_custom_call.1} parent=1 // loop_exit
      _
    %322 = vsyncpa [#allocation3], 1
    %s323 = scalar_lea.sflag [#allocation3], 1
    %324 = vsyncpa %s323, 1
    %325 = vsyncpa [#allocation6], 1
    %326 = vsyncpa [#allocation4], 1
    %s327 = scalar_lea.sflag [#allocation4], 1
    %328 = vsyncpa %s327, 1

</llo_original>
